<compile_context>
chip_gen: v7x
topology: tpu7x:2x2x1
jax: 0.10.0
libtpu: 0.0.40
codegen_flags: <defaults>
</compile_context>

<pallas_src>
import functools

import jax
import jax.numpy as jnp
from jax import lax
from jax.experimental import pallas as pl
from jax.experimental.pallas import tpu as pltpu

EPS = 1e-5  # BatchNorm2d default


def _round_up(x, m):
    return (x + m - 1) // m * m


# ---------------------------------------------------------------------------
# Kernel 1: conv-as-matmul + bias, streaming y, per-tile BN partial statistics.
# ---------------------------------------------------------------------------
def conv_stats_kernel(xcol_ref, w_ref, b_ref, y_ref, stats_ref, *, m_valid):
    # xcol_ref: (TM, Kpad)   w_ref: (Kpad, OCpad)   b_ref: (1, OCpad)
    # y_ref:    (TM, OCpad)  stats_ref: (1, 2, OCpad)
    tm = xcol_ref.shape[0]

    y = jnp.dot(xcol_ref[...], w_ref[...], preferred_element_type=jnp.float32)
    y = y + b_ref[...]
    y_ref[...] = y.astype(y_ref.dtype)

    # Mask rows past the true M (zero-padded tail tile) so they do not pollute
    # the batch statistics.
    row = pl.program_id(0) * tm + lax.broadcasted_iota(jnp.int32, (tm, 1), 0)
    ym = jnp.where(row < m_valid, y, 0.0)

    s = jnp.sum(ym, axis=0, keepdims=True)        # (1, OCpad)
    ss = jnp.sum(ym * ym, axis=0, keepdims=True)  # (1, OCpad)
    stats_ref[...] = jnp.concatenate([s, ss], axis=0).reshape(stats_ref.shape)


# ---------------------------------------------------------------------------
# Kernel 2: apply fused BN affine  out = y * a + b  (a, b per channel).
# ---------------------------------------------------------------------------
def bn_apply_kernel(y_ref, a_ref, b_ref, o_ref):
    o_ref[...] = (y_ref[...] * a_ref[...] + b_ref[...]).astype(o_ref.dtype)


def im2col(x, kh, kw):
    """x: (N, C, H, W) -> (N*OH*OW, C*KH*KW); column order c-major, (kh,kw)-minor."""
    n, c, h, w = x.shape
    oh, ow = h - kh + 1, w - kw + 1
    cols = []
    for i in range(kh):
        for j in range(kw):
            cols.append(x[:, :, i:i + oh, j:j + ow])        # (N, C, OH, OW)
    xcol = jnp.stack(cols, axis=2)                          # (N, C, KH*KW, OH, OW)
    xcol = xcol.transpose(0, 3, 4, 1, 2)                    # (N, OH, OW, C, KH*KW)
    return xcol.reshape(n * oh * ow, c * kh * kw), oh, ow


def conv2d_bn(x, weight, bias, gamma, beta, *, tm=512):
    """x: (N, Cin, H, W) NCHW f32. weight: (OC, Cin, KH, KW). -> (N, OC, OH, OW)."""
    n, cin, h, w = x.shape
    oc, _, kh, kw = weight.shape

    xcol, oh, ow = im2col(x, kh, kw)                        # (M, K)
    m, k = xcol.shape

    # Lane-dense padding: K and OC up to multiples of 128.
    kpad = _round_up(k, 128)
    ocpad = _round_up(oc, 128)

    # M tiling (rows). Keep tiles sublane-aligned; pad M to a multiple of TM.
    tm = min(tm, _round_up(m, 8))
    mpad = _round_up(m, tm)
    grid_m = mpad // tm

    xcol_p = jnp.pad(xcol, ((0, mpad - m), (0, kpad - k)))
    w2 = jnp.pad(weight.reshape(oc, k).T, ((0, kpad - k), (0, ocpad - oc)))  # (Kpad, OCpad)
    b2 = jnp.pad(bias.reshape(1, oc), ((0, 0), (0, ocpad - oc)))
    g_pad = jnp.pad(gamma, (0, ocpad - oc))
    be_pad = jnp.pad(beta, (0, ocpad - oc))

    cparams = pltpu.CompilerParams(
        dimension_semantics=("parallel",),
        vmem_limit_bytes=32 * 1024 * 1024,   # safe on v5e/v6e/v7x; usage ~1 MiB/step
    )

    # ---- Pass 1: matmul + bias, per-tile sum / sum-of-squares partials -------
    y, stats = pl.pallas_call(
        functools.partial(conv_stats_kernel, m_valid=m),
        out_shape=(
            jax.ShapeDtypeStruct((mpad, ocpad), jnp.float32),
            jax.ShapeDtypeStruct((grid_m, 2, ocpad), jnp.float32),
        ),
        grid=(grid_m,),
        in_specs=[
            pl.BlockSpec((tm, kpad), lambda i: (i, 0)),       # streamed
            pl.BlockSpec((kpad, ocpad), lambda i: (0, 0)),    # resident weight
            pl.BlockSpec((1, ocpad), lambda i: (0, 0)),       # resident bias
        ],
        out_specs=(
            pl.BlockSpec((tm, ocpad), lambda i: (i, 0)),
            pl.BlockSpec((1, 2, ocpad), lambda i: (i, 0, 0)),
        ),
        compiler_params=cparams,
    )(xcol_p, w2, b2)

    # ---- Per-channel BN coefficients (tiny, plain JAX) -----------------------
    sums = jnp.sum(stats[:, 0, :], axis=0)                   # (OCpad,)
    sumsqs = jnp.sum(stats[:, 1, :], axis=0)                 # (OCpad,)
    mean = sums / m
    var = jnp.maximum(sumsqs / m - mean * mean, 0.0)         # biased variance
    a = g_pad * lax.rsqrt(var + EPS)
    bb = be_pad - mean * a

    # ---- Pass 2: out = y * a + b --------------------------------------------
    out = pl.pallas_call(
        bn_apply_kernel,
        out_shape=jax.ShapeDtypeStruct((mpad, ocpad), jnp.float32),
        grid=(grid_m,),
        in_specs=[
            pl.BlockSpec((tm, ocpad), lambda i: (i, 0)),      # streamed y
            pl.BlockSpec((1, ocpad), lambda i: (0, 0)),       # resident a
            pl.BlockSpec((1, ocpad), lambda i: (0, 0)),       # resident b
        ],
        out_specs=pl.BlockSpec((tm, ocpad), lambda i: (i, 0)),
        compiler_params=cparams,
    )(y, a.reshape(1, ocpad), bb.reshape(1, ocpad))

    # Slice off padding, back to NCHW (PyTorch interface).
    return out[:m, :oc].reshape(n, oh, ow, oc).transpose(0, 3, 1, 2)


if __name__ == "__main__":
    key = jax.random.PRNGKey(0)
    k_x, k_w, k_b = jax.random.split(key, 3)

    N, CIN, H, W = 2, 4, 16, 16
    OC, KH, KW = 8, 3, 3

    x = jax.random.normal(k_x, (N, CIN, H, W), dtype=jnp.float32)
    weight = jax.random.normal(k_w, (OC, CIN, KH, KW), dtype=jnp.float32) * 0.1
    bias = jax.random.normal(k_b, (OC,), dtype=jnp.float32) * 0.1
    gamma = jnp.ones((OC,), dtype=jnp.float32)   # BatchNorm2d default init
    beta = jnp.zeros((OC,), dtype=jnp.float32)

    # tm=128 so the demo exercises multiple M tiles (M = 2*14*14 = 392 -> 4 tiles).
    out = conv2d_bn(x, weight, bias, gamma, beta, tm=128)
    jax.block_until_ready(out)

    # Pure-JAX reference (conv + training-mode BN).
    y = lax.conv_general_dilated(
        x, weight, window_strides=(1, 1), padding="VALID",
        dimension_numbers=("NCHW", "OIHW", "NCHW"))
    y = y + bias[None, :, None, None]
    mu = y.mean(axis=(0, 2, 3), keepdims=True)
    var = ((y - mu) ** 2).mean(axis=(0, 2, 3), keepdims=True)
    ref = (y - mu) / jnp.sqrt(var + EPS) * gamma[None, :, None, None] \
        + beta[None, :, None, None]

    assert out.shape == (N, OC, H - KH + 1, W - KW + 1)
    assert jnp.allclose(out, ref, atol=1e-4, rtol=1e-4)
    print("KERNEL_OK")
</pallas_src>

<mosaic_0001>
module attributes {stable_mosaic.version = 11 : i64} {
  func.func @conv_stats_kernel(%arg0: i32, %arg1: memref<128x128xf32, #tpu.memory_space<vmem>>, %arg2: memref<128x128xf32, #tpu.memory_space<vmem>>, %arg3: memref<1x128xf32, #tpu.memory_space<vmem>>, %arg4: memref<128x128xf32, #tpu.memory_space<vmem>>, %arg5: memref<1x2x128xf32, #tpu.memory_space<vmem>>) attributes {dimension_semantics = [#tpu.dimension_semantics<parallel>], iteration_bounds = array<i64: 4>, scalar_prefetch = 0 : i64, scratch_operands = 0 : i64, tpu.core_type = #tpu.core_type<tc>, window_params = [{transform_indices = @transform_0, window_bounds = array<i64: 128, 128>}, {pipeline_mode = #tpu.pipeline_mode<synchronous>, transform_indices = @transform_1, window_bounds = array<i64: 128, 128>}, {pipeline_mode = #tpu.pipeline_mode<synchronous>, transform_indices = @transform_2, window_bounds = array<i64: 1, 128>}, {transform_indices = @transform_3, window_bounds = array<i64: 128, 128>}, {transform_indices = @transform_4, window_bounds = array<i64: 1, 2, 128>}]} {
    %c0 = arith.constant 0 : index
    %c0_0 = arith.constant 0 : index
    %0 = vector.load %arg1[%c0, %c0_0] : memref<128x128xf32, #tpu.memory_space<vmem>>, vector<128x128xf32>
    %c0_1 = arith.constant 0 : index
    %c0_2 = arith.constant 0 : index
    %1 = vector.load %arg2[%c0_1, %c0_2] : memref<128x128xf32, #tpu.memory_space<vmem>>, vector<128x128xf32>
    %cst = arith.constant dense<0.000000e+00> : vector<128x128xf32>
    %2 = tpu.matmul %0, %1, %cst {dimension_numbers = #tpu.dot_dimension_numbers<[1], [0], [0], [1], [0, 0, 1, 1], [], []>} : vector<128x128xf32>, vector<128x128xf32>, vector<128x128xf32> -> vector<128x128xf32>
    %c0_3 = arith.constant 0 : index
    %c0_4 = arith.constant 0 : index
    %3 = vector.load %arg3[%c0_3, %c0_4] : memref<1x128xf32, #tpu.memory_space<vmem>>, vector<1x128xf32>
    %4 = vector.broadcast %3 : vector<1x128xf32> to vector<128x128xf32>
    %5 = arith.addf %2, %4 : vector<128x128xf32>
    %c0_5 = arith.constant 0 : index
    %c0_6 = arith.constant 0 : index
    %6 = vector.load %arg4[%c0_5, %c0_6] : memref<128x128xf32, #tpu.memory_space<vmem>>, vector<128x128xf32>
    tpu.vector_store %arg4[%c0_5, %c0_6], %5 {strides = array<i32>} : memref<128x128xf32, #tpu.memory_space<vmem>>, vector<128x128xf32>,
    %c128_i32 = arith.constant 128 : i32
    %7 = arith.muli %arg0, %c128_i32 : i32
    %8 = tpu.iota {dimensions = array<i32: 0>} : vector<128x1xi32>
    %9 = vector.broadcast %7 : i32 to vector<128x1xi32>
    %10 = arith.addi %9, %8 : vector<128x1xi32>
    %c392_i32 = arith.constant 392 : i32
    %11 = vector.broadcast %c392_i32 : i32 to vector<128x1xi32>
    %12 = arith.cmpi slt, %10, %11 : vector<128x1xi32>
    %cst_7 = arith.constant 0.000000e+00 : f32
    %13 = vector.shape_cast %12 : vector<128x1xi1> to vector<128x1xi1>
    %14 = vector.broadcast %13 : vector<128x1xi1> to vector<128x128xi1>
    %15 = vector.broadcast %cst_7 : f32 to vector<128x128xf32>
    %16 = arith.select %14, %5, %15 : vector<128x128xi1>, vector<128x128xf32>
    %cst_8 = arith.constant dense<0.000000e+00> : vector<128xf32>
    %17 = vector.multi_reduction <add>, %16, %cst_8 [0] : vector<128x128xf32> to vector<128xf32>
    %18 = vector.shape_cast %17 : vector<128xf32> to vector<1x128xf32>
    %19 = arith.mulf %16, %16 : vector<128x128xf32>
    %cst_9 = arith.constant dense<0.000000e+00> : vector<128xf32>
    %20 = vector.multi_reduction <add>, %19, %cst_9 [0] : vector<128x128xf32> to vector<128xf32>
    %21 = vector.shape_cast %20 : vector<128xf32> to vector<1x128xf32>
    %22 = tpu.concatenate %18, %21 in 0 : vector<1x128xf32>, vector<1x128xf32> -> vector<2x128xf32>
    %23 = vector.shape_cast %22 : vector<2x128xf32> to vector<1x2x128xf32>
    %c0_10 = arith.constant 0 : index
    %c0_11 = arith.constant 0 : index
    %c0_12 = arith.constant 0 : index
    %24 = vector.load %arg5[%c0_10, %c0_11, %c0_12] : memref<1x2x128xf32, #tpu.memory_space<vmem>>, vector<1x2x128xf32>
    tpu.vector_store %arg5[%c0_10, %c0_11, %c0_12], %23 {strides = array<i32>} : memref<1x2x128xf32, #tpu.memory_space<vmem>>, vector<1x2x128xf32>,
    return
  }
  func.func @transform_0(%arg0: i32) -> (i32, i32) {
    %c0_i32 = arith.constant 0 : i32
    %c0_i32_0 = arith.constant 0 : i32
    return %arg0, %c0_i32 : i32, i32
  }
  func.func @transform_1(%arg0: i32) -> (i32, i32) {
    %c0_i32 = arith.constant 0 : i32
    %c0_i32_0 = arith.constant 0 : i32
    %c0_i32_1 = arith.constant 0 : i32
    return %c0_i32, %c0_i32_0 : i32, i32
  }
  func.func @transform_2(%arg0: i32) -> (i32, i32) {
    %c0_i32 = arith.constant 0 : i32
    %c0_i32_0 = arith.constant 0 : i32
    %c0_i32_1 = arith.constant 0 : i32
    return %c0_i32, %c0_i32_0 : i32, i32
  }
  func.func @transform_3(%arg0: i32) -> (i32, i32) {
    %c0_i32 = arith.constant 0 : i32
    %c0_i32_0 = arith.constant 0 : i32
    return %arg0, %c0_i32 : i32, i32
  }
  func.func @transform_4(%arg0: i32) -> (i32, i32, i32) {
    %c0_i32 = arith.constant 0 : i32
    %c0_i32_0 = arith.constant 0 : i32
    %c0_i32_1 = arith.constant 0 : i32
    return %arg0, %c0_i32, %c0_i32_0 : i32, i32, i32
  }
}

</mosaic_0001>

<llo_original>
// kernel: tpu_custom_call.1
$region0: #{tpu_custom_call.1}
  #allocation0 [shape = 'u32[]', space=smem, size = 0x4, offset = 0x4, fixed_abs, tag = 'smem constant byte address 0x4 - core index']
  #allocation1 [shape = 'u32[144,128]{1,0:T(1,128)}', space=vmem, size = 0x12000, scoped, tag = 'internal scratch']
  %s0 = inlined_call_operand.hbm [shape: f32[512,128], index: 0, kind: input, shape index: {}]
  %s1 = inlined_call_operand.hbm [shape: f32[128,128], index: 1, kind: input, shape index: {}]
  %s2 = inlined_call_operand.vmem [shape: f32[1,128], index: 2, kind: input, shape index: {}]
  %s3 = inlined_call_operand.hbm [shape: f32[512,128], index: 3, kind: output, shape index: {0}]
  %s4 = inlined_call_operand.hbm [shape: f32[4,2,128], index: 4, kind: output, shape index: {1}]
  %5 = xla_tuple %s3, %s4
  %s6 = sld [smem:[#allocation0]]
  $region61: #{tpu_custom_call.1} parent=0
    _
  %s8 = ssub.s32 1, %s6
  %s9 = scalar_select 0, %s8, %s6
  $region1: #{tpu_custom_call.1} parent=0
    #allocation2 [shape = 'u8[131072]{0}', space=vmem, size = 0x20000, scoped, tag = 'input window, operand 0']
    #allocation3 [shape = 's32[2]{0}', space=sflag, size = 0x8, scoped, tag = 'scoped memory for tpu_custom_call.1']
    #allocation4 [shape = 's32[2]{0}', space=sflag, size = 0x8, scoped, tag = 'scoped memory for tpu_custom_call.1']
    #allocation5 [shape = 'u8[65536]{0}', space=vmem, size = 0x10000, scoped, tag = 'input window, operand 1, single buffered']
    #allocation6 [shape = 's32[1]{0}', space=sflag, size = 0x4, scoped, tag = 'scoped memory for tpu_custom_call.1']
    #allocation7 [shape = 'u8[131072]{0}', space=vmem, size = 0x20000, scoped, tag = 'output window, operand 0']
    #allocation8 [shape = 'u8[2048]{0}', space=vmem, size = 0x800, scoped, tag = 'output window, operand 1']
    #allocation9 [shape = 's32[2]{0}', space=sflag, size = 0x8, scoped, tag = 'scoped memory for tpu_custom_call.1']
    %10 = vsyncpa [#allocation3], 0
    %s11 = scalar_lea.sflag [#allocation3], 1
    %12 = vsyncpa %s11, 0
    %13 = vsyncpa [#allocation6], 0
    %14 = vsyncpa [#allocation4], 0
    %s15 = scalar_lea.sflag [#allocation4], 1
    %16 = vsyncpa %s15, 0
    %17 = vsyncpa [#allocation9], 0
    %s18 = scalar_lea.sflag [#allocation9], 1
    %19 = vsyncpa %s18, 0
    loop: start=0, step=1, limit=6
    $region2: #{tpu_custom_call.1} parent=1 // loop_pre_header
      _
    $region3: #{tpu_custom_call.1} parent=1 // loop_header
      %s21 = sphi 0, %s25
      %p22 = scmp.ge.s32.totalorder %s21, 6
      %s31 = sphi 0, %s33
      %s34 = sphi 0, %s31
      %s35 = sphi 0, %s34
      %s51 = sphi 0, %s35
      %s55 = sphi 0, %s55
      %s57 = sphi 0, %s55
      %s58 = sphi 0, %s57
      %s72 = sphi 0, %s58
      %s76 = sphi 0, %s76
      %s78 = sphi 0, %s76
      %s79 = sphi 0, %s78
      %s93 = sphi 0, %s79
      %s99 = sphi 0, %s101
      %s102 = sphi 0, %s99
      %s103 = sphi 0, %s102
      %s119 = sphi 0, %s103
      %s125 = sphi 0, %s127
      %s128 = sphi 0, %s125
      %s129 = sphi 0, %s128
      %s145 = sphi 0, %s129
    $region4: #{tpu_custom_call.1} parent=1 // loop_header_branch
      %24 = sbr.rel (%p22) target = $region8
    $region5: #{tpu_custom_call.1} parent=1 // loop_body
      %s26 = ssub.s32 %s21, 1
      %s27 = ssub.s32 %s21, 2
      %s28 = sadd.s32 %s21, 1
      %s29 = ssub.s32 %s21, %s28
      %p30 = scmp.eq.s32.totalorder %s29, 0
      %s32 = sadd.s32 %s31, 1
      %s33 = scalar_select %p30, %s31, %s32
      %p36 = pneg %p30
      %p37 = scmp.eq.s32.totalorder %s21, 3
      %p38 = por %p36, %p37
      %p39 = scmp.ne.s32.totalorder %s31, %s34
      %p40 = scmp.eq.s32.totalorder %s21, 0
      %p41 = por %p39, %p40
      %p42 = scmp.ne.s32.totalorder %s31, %s34
      %p43 = scmp.eq.s32.totalorder %s26, 3
      %p44 = por %p42, %p43
      %p45 = scmp.ne.s32.totalorder %s34, %s35
      %p46 = scmp.eq.s32.totalorder %s26, 0
      %p47 = por %p45, %p46
      %p48 = scmp.ne.s32.totalorder %s34, %s35
      %p49 = scmp.eq.s32.totalorder %s27, 3
      %p50 = por %p48, %p49
      %p52 = scmp.ne.s32.totalorder %s35, %s51
      %p53 = scmp.eq.s32.totalorder %s27, 0
      %p54 = por %p52, %p53
      %s56 = sadd.s32 %s55, 1
      %p59 = scmp.eq.s32.totalorder %s21, 3
      %p60 = scmp.ne.s32.totalorder %s55, %s57
      %p61 = scmp.eq.s32.totalorder %s21, 0
      %p62 = por %p60, %p61
      %p63 = scmp.ne.s32.totalorder %s55, %s57
      %p64 = scmp.eq.s32.totalorder %s26, 3
      %p65 = por %p63, %p64
      %p66 = scmp.ne.s32.totalorder %s57, %s58
      %p67 = scmp.eq.s32.totalorder %s26, 0
      %p68 = por %p66, %p67
      %p69 = scmp.ne.s32.totalorder %s57, %s58
      %p70 = scmp.eq.s32.totalorder %s27, 3
      %p71 = por %p69, %p70
      %p73 = scmp.ne.s32.totalorder %s58, %s72
      %p74 = scmp.eq.s32.totalorder %s27, 0
      %p75 = por %p73, %p74
      %s77 = sadd.s32 %s76, 1
      %p80 = scmp.eq.s32.totalorder %s21, 3
      %p81 = scmp.ne.s32.totalorder %s76, %s78
      %p82 = scmp.eq.s32.totalorder %s21, 0
      %p83 = por %p81, %p82
      %p84 = scmp.ne.s32.totalorder %s76, %s78
      %p85 = scmp.eq.s32.totalorder %s26, 3
      %p86 = por %p84, %p85
      %p87 = scmp.ne.s32.totalorder %s78, %s79
      %p88 = scmp.eq.s32.totalorder %s26, 0
      %p89 = por %p87, %p88
      %p90 = scmp.ne.s32.totalorder %s78, %s79
      %p91 = scmp.eq.s32.totalorder %s27, 3
      %p92 = por %p90, %p91
      %p94 = scmp.ne.s32.totalorder %s79, %s93
      %p95 = scmp.eq.s32.totalorder %s27, 0
      %p96 = por %p94, %p95
      %s97 = ssub.s32 %s21, %s28
      %p98 = scmp.eq.s32.totalorder %s97, 0
      %s100 = sadd.s32 %s99, 1
      %s101 = scalar_select %p98, %s99, %s100
      %p104 = pneg %p98
      %p105 = scmp.eq.s32.totalorder %s21, 3
      %p106 = por %p104, %p105
      %p107 = scmp.ne.s32.totalorder %s99, %s102
      %p108 = scmp.eq.s32.totalorder %s21, 0
      %p109 = por %p107, %p108
      %p110 = scmp.ne.s32.totalorder %s99, %s102
      %p111 = scmp.eq.s32.totalorder %s26, 3
      %p112 = por %p110, %p111
      %p113 = scmp.ne.s32.totalorder %s102, %s103
      %p114 = scmp.eq.s32.totalorder %s26, 0
      %p115 = por %p113, %p114
      %p116 = scmp.ne.s32.totalorder %s102, %s103
      %p117 = scmp.eq.s32.totalorder %s27, 3
      %p118 = por %p116, %p117
      %p120 = scmp.ne.s32.totalorder %s103, %s119
      %p121 = scmp.eq.s32.totalorder %s27, 0
      %p122 = por %p120, %p121
      %s123 = ssub.s32 %s21, %s28
      %p124 = scmp.eq.s32.totalorder %s123, 0
      %s126 = sadd.s32 %s125, 1
      %s127 = scalar_select %p124, %s125, %s126
      %p130 = pneg %p124
      %p131 = scmp.eq.s32.totalorder %s21, 3
      %p132 = por %p130, %p131
      %p133 = scmp.ne.s32.totalorder %s125, %s128
      %p134 = scmp.eq.s32.totalorder %s21, 0
      %p135 = por %p133, %p134
      %p136 = scmp.ne.s32.totalorder %s125, %s128
      %p137 = scmp.eq.s32.totalorder %s26, 3
      %p138 = por %p136, %p137
      %p139 = scmp.ne.s32.totalorder %s128, %s129
      %p140 = scmp.eq.s32.totalorder %s26, 0
      %p141 = por %p139, %p140
      %p142 = scmp.ne.s32.totalorder %s128, %s129
      %p143 = scmp.eq.s32.totalorder %s27, 3
      %p144 = por %p142, %p143
      %p146 = scmp.ne.s32.totalorder %s129, %s145
      %p147 = scmp.eq.s32.totalorder %s27, 0
      %p148 = por %p146, %p147
      %p149 = scmp.le.s32.totalorder 1, %s21
      %p150 = scmp.lt.s32.totalorder %s21, 5
      %p151 = pnand %p149, %p150
      %p152 = pneg %p151
      // Predicated region
      $region9: #{tpu_custom_call.1} parent=5 // pred_check
        _
      $region10: #{tpu_custom_call.1} parent=5 // pred_check_branch
        %154 = sbr.rel (%p151) target = $region12
      $region11: #{tpu_custom_call.1} parent=5 // pred_region
        %s155 = ssub.s32 %s21, 1
        // Predicated region
        $region13: #{tpu_custom_call.1} parent=11 // pred_check
          %p156 = pneg %p68
        $region14: #{tpu_custom_call.1} parent=11 // pred_check_branch
          %158 = sbr.rel (%p156) target = $region16
        $region15: #{tpu_custom_call.1} parent=11 // pred_region
          %s160 = ssub.s32 2048, 2048
          %161 = vsyncadd [#allocation6], %s160
          %s162 = sshll.u32 [#allocation5], 4
          %s163 = int_to_ptr.vmem [resolvable:$true] %s162
          %168 = dma.hbm_to_vmem [thread:$0]  %s1, 2048, %s163, [#allocation6], 128, 128, 8
        $region16: #{tpu_custom_call.1} parent=11 // pred_fallthru
          _
        // Predicated region
        $region17: #{tpu_custom_call.1} parent=11 // pred_check
          %p169 = pneg %p89
        $region18: #{tpu_custom_call.1} parent=11 // pred_check_branch
          %171 = sbr.rel (%p169) target = $region20
        $region19: #{tpu_custom_call.1} parent=11 // pred_region
          _
        $region20: #{tpu_custom_call.1} parent=11 // pred_fallthru
          _
      $region12: #{tpu_custom_call.1} parent=5 // pred_fallthru
        _
      %p172 = scmp.lt.s32.totalorder %s21, 4
      // Predicated region
      $region21: #{tpu_custom_call.1} parent=5 // pred_check
        %p173 = pneg %p172
      $region22: #{tpu_custom_call.1} parent=5 // pred_check_branch
        %175 = sbr.rel (%p173) target = $region24
      $region23: #{tpu_custom_call.1} parent=5 // pred_region
        // Predicated region
        $region25: #{tpu_custom_call.1} parent=23 // pred_check
          %p176 = pneg %p41
        $region26: #{tpu_custom_call.1} parent=23 // pred_check_branch
          %178 = sbr.rel (%p176) target = $region28
        $region27: #{tpu_custom_call.1} parent=23 // pred_region
          %s179 = sand.u32 %s31, 1
          %s180 = scalar_lea.sflag [#allocation3], %s179
          %s181 = sand.u32 %s31, 1
          %s182 = smul.addr %s181, 128
          %s183 = scalar_lea.vmem [#allocation2], %s182
          %s184 = smul.u32 16, %s21
          %s186 = ssub.s32 2048, 2048
          %187 = vsyncadd %s180, %s186
          %s188 = smul.addr %s184, 128
          %s189 = scalar_lea.hbm %s0, %s188
          %s190 = sshll.u32 %s183, 4
          %s191 = int_to_ptr.vmem [resolvable:$true] %s190
          %196 = dma.hbm_to_vmem [thread:$0]  %s189, 2048, %s191, %s180, 128, 128, 8
        $region28: #{tpu_custom_call.1} parent=23 // pred_fallthru
          _
      $region24: #{tpu_custom_call.1} parent=5 // pred_fallthru
        _
      %p197 = scmp.le.s32.totalorder 1, %s21
      %p198 = scmp.lt.s32.totalorder %s21, 5
      %p199 = pnand %p197, %p198
      %p200 = pneg %p199
      // Predicated region
      $region29: #{tpu_custom_call.1} parent=5 // pred_check
        _
      $region30: #{tpu_custom_call.1} parent=5 // pred_check_branch
        %202 = sbr.rel (%p199) target = $region32
      $region31: #{tpu_custom_call.1} parent=5 // pred_region
        %s203 = ssub.s32 %s21, 1
        %s204 = sand.u32 %s34, 1
        %s205 = scalar_lea.sflag [#allocation3], %s204
        %s206 = sand.u32 %s34, 1
        %s207 = smul.addr %s206, 128
        %s208 = scalar_lea.vmem [#allocation2], %s207
        // Predicated region
        $region33: #{tpu_custom_call.1} parent=31 // pred_check
          %p209 = pneg %p47
        $region34: #{tpu_custom_call.1} parent=31 // pred_check_branch
          %211 = sbr.rel (%p209) target = $region36
        $region35: #{tpu_custom_call.1} parent=31 // pred_region
          %212 = dma.done %s205, 2048
        $region36: #{tpu_custom_call.1} parent=31 // pred_fallthru
          _
        // Predicated region
        $region37: #{tpu_custom_call.1} parent=31 // pred_check
          %p213 = pneg %p68
        $region38: #{tpu_custom_call.1} parent=31 // pred_check_branch
          %215 = sbr.rel (%p213) target = $region40
        $region39: #{tpu_custom_call.1} parent=31 // pred_region
          %216 = dma.done [#allocation6], 2048
        $region40: #{tpu_custom_call.1} parent=31 // pred_fallthru
          _
        %s217 = sand.u32 %s34, 1
        %s218 = scalar_lea.sflag [#allocation3], %s217
        %s219 = sand.u32 %s34, 1
        %s220 = smul.addr %s219, 128
        %s221 = scalar_lea.vmem [#allocation2], %s220
        %p222 = pneg %p47
        %p223 = pneg %p44
        %p224 = pneg %p68
        %p225 = pneg %p65
        %p226 = pneg %p89
        %p227 = pneg %p86
        %p228 = pneg %p115
        %p229 = pneg %p112
        %s230 = sand.u32 %s102, 1
        %s231 = scalar_lea.sflag [#allocation4], %s230
        %s232 = sand.u32 %s102, 1
        %s233 = smul.addr %s232, 128
        %s234 = scalar_lea.vmem [#allocation7], %s233
        %p235 = pneg %p141
        %p236 = pneg %p138
        %s237 = sand.u32 %s128, 1
        %s238 = scalar_lea.sflag [#allocation9], %s237
        %s239 = sand.u32 %s128, 1
        %s240 = smul.addr %s239, 2
        %s241 = scalar_lea.vmem [#allocation8], %s240
        %s242 = smul.u32 16, %s26
        %s243 = smul.u32 16, %s26
        %v244 = vld [vmem:[%s208] sm:$0xff]
        %v245 = vld [vmem:[%s208 + $0x8] sm:$0xff]
        %v246 = vld [vmem:[%s208 + $0x10] sm:$0xff]
        %v247 = vld [vmem:[%s208 + $0x18] sm:$0xff]
        %v248 = vld [vmem:[%s208 + $0x20] sm:$0xff]
        %v249 = vld [vmem:[%s208 + $0x28] sm:$0xff]
        %v250 = vld [vmem:[%s208 + $0x30] sm:$0xff]
        %v251 = vld [vmem:[%s208 + $0x38] sm:$0xff]
        %v252 = vld [vmem:[%s208 + $0x40] sm:$0xff]
        %v253 = vld [vmem:[%s208 + $0x48] sm:$0xff]
        %v254 = vld [vmem:[%s208 + $0x50] sm:$0xff]
        %v255 = vld [vmem:[%s208 + $0x58] sm:$0xff]
        %v256 = vld [vmem:[%s208 + $0x60] sm:$0xff]
        %v257 = vld [vmem:[%s208 + $0x68] sm:$0xff]
        %v258 = vld [vmem:[%s208 + $0x70] sm:$0xff]
        %v259 = vld [vmem:[%s208 + $0x78] sm:$0xff]
        %v260 = vld [vmem:[#allocation5] sm:$0xff]
        %v261 = vld [vmem:[#allocation5 + $0x8] sm:$0xff]
        %v262 = vld [vmem:[#allocation5 + $0x10] sm:$0xff]
        %v263 = vld [vmem:[#allocation5 + $0x18] sm:$0xff]
        %v264 = vld [vmem:[#allocation5 + $0x20] sm:$0xff]
        %v265 = vld [vmem:[#allocation5 + $0x28] sm:$0xff]
        %v266 = vld [vmem:[#allocation5 + $0x30] sm:$0xff]
        %v267 = vld [vmem:[#allocation5 + $0x38] sm:$0xff]
        %v268 = vld [vmem:[#allocation5 + $0x40] sm:$0xff]
        %v269 = vld [vmem:[#allocation5 + $0x48] sm:$0xff]
        %v270 = vld [vmem:[#allocation5 + $0x50] sm:$0xff]
        %v271 = vld [vmem:[#allocation5 + $0x58] sm:$0xff]
        %v272 = vld [vmem:[#allocation5 + $0x60] sm:$0xff]
        %v273 = vld [vmem:[#allocation5 + $0x68] sm:$0xff]
        %v274 = vld [vmem:[#allocation5 + $0x70] sm:$0xff]
        %v275 = vld [vmem:[#allocation5 + $0x78] sm:$0xff]
        %v276 = vld [vmem:[%s2] sm:$0x1]
        %v278 = vlaneseq
        %v279 = vshrl.u32 %v278, 7
        %v280 = vsub.s32 0, %v279
        %v281 = vrot.slane %v276, %v280
        %283 = vmatprep.subr.mxu0 0.0
        %284 = vmatpush1.msra.mxu0 %v260
        %285 = vmatprep.subr.mxu0 0.0
        %286 = vmatpush1.msra.mxu0 %v261
        %287 = vmatprep.subr.mxu0 0.0
        %288 = vmatpush1.msra.mxu0 %v262
        %289 = vmatprep.subr.mxu0 0.0
        %290 = vmatpush1.msra.mxu0 %v263
        %291 = vmatprep.subr.mxu0 0.0
        %292 = vmatpush1.msra.mxu0 %v264
        %293 = vmatprep.subr.mxu0 0.0
        %294 = vmatpush1.msra.mxu0 %v265
        %295 = vmatprep.subr.mxu0 0.0
        %296 = vmatpush1.msra.mxu0 %v266
        %297 = vmatprep.subr.mxu0 0.0
        %298 = vmatpush1.msra.mxu0 %v267
        %299 = vmatprep.subr.mxu0 0.0
        %300 = vmatpush1.msra.mxu0 %v268
        %301 = vmatprep.subr.mxu0 0.0
        %302 = vmatpush1.msra.mxu0 %v269
        %303 = vmatprep.subr.mxu0 0.0
        %304 = vmatpush1.msra.mxu0 %v270
        %305 = vmatprep.subr.mxu0 0.0
        %306 = vmatpush1.msra.mxu0 %v271
        %307 = vmatprep.subr.mxu0 0.0
        %308 = vmatpush1.msra.mxu0 %v272
        %309 = vmatprep.subr.mxu0 0.0
        %310 = vmatpush1.msra.mxu0 %v273
        %311 = vmatprep.subr.mxu0 0.0
        %312 = vmatpush1.msra.mxu0 %v274
        %313 = vmatprep.subr.mxu0 0.0
        %314 = vmatpush1.msra.mxu0 %v275
        %315 = vmatprep.subr.mxu0 0.0
        %316 = vmatpush1.msra.mxu0 0.0
        %317 = vmatprep.subr.mxu0 0.0
        %318 = vmatpush1.msra.mxu0 0.0
        %319 = vmatprep.subr.mxu0 0.0
        %320 = vmatpush1.msra.mxu0 0.0
        %321 = vmatprep.subr.mxu0 0.0
        %322 = vmatpush1.msra.mxu0 0.0
        %323 = vmatprep.subr.mxu0 0.0
        %324 = vmatpush1.msra.mxu0 0.0
        %325 = vmatprep.subr.mxu0 0.0
        %326 = vmatpush1.msra.mxu0 0.0
        %327 = vmatprep.subr.mxu0 0.0
        %328 = vmatpush1.msra.mxu0 0.0
        %329 = vmatprep.subr.mxu0 0.0
        %330 = vmatpush1.msra.mxu0 0.0
        %331 = vmatprep.subr.mxu0 0.0
        %332 = vmatpush1.msra.mxu0 0.0
        %333 = vmatprep.subr.mxu0 0.0
        %334 = vmatpush1.msra.mxu0 0.0
        %335 = vmatprep.subr.mxu0 0.0
        %336 = vmatpush1.msra.mxu0 0.0
        %337 = vmatprep.subr.mxu0 0.0
        %338 = vmatpush1.msra.mxu0 0.0
        %339 = vmatprep.subr.mxu0 0.0
        %340 = vmatpush1.msra.mxu0 0.0
        %341 = vmatprep.subr.mxu0 0.0
        %342 = vmatpush1.msra.mxu0 0.0
        %343 = vmatprep.subr.mxu0 0.0
        %344 = vmatpush1.msra.mxu0 0.0
        %345 = vmatprep.subr.mxu0 0.0
        %346 = vmatpush1.msra.mxu0 0.0
        %347 = vmatprep.mubr.f32.mxu0 0.0
        %348 = vmatmul.mubr.f32.gmra.mrb[0].mxu0 %v244
        %v349 = vpop.f32.mrb[0].mxu0
        %v350 = vadd.f32 %v281, %v349
        %v351 = vpop.f32.mrb[0].mxu0
        %352 = vmatprep.mubr.f32.mxu0 0.0
        %353 = vmatmul.mubr.f32.gmra.mrb[0].mxu0 %v245
        %v354 = vpop.f32.mrb[0].mxu0
        %v355 = vadd.f32 %v281, %v354
        %v356 = vpop.f32.mrb[0].mxu0
        %357 = vmatprep.mubr.f32.mxu0 0.0
        %358 = vmatmul.mubr.f32.gmra.mrb[0].mxu0 %v246
        %v359 = vpop.f32.mrb[0].mxu0
        %v360 = vadd.f32 %v281, %v359
        %v361 = vpop.f32.mrb[0].mxu0
        %362 = vmatprep.mubr.f32.mxu0 0.0
        %363 = vmatmul.mubr.f32.gmra.mrb[0].mxu0 %v247
        %v364 = vpop.f32.mrb[0].mxu0
        %v365 = vadd.f32 %v281, %v364
        %v366 = vpop.f32.mrb[0].mxu0
        %367 = vmatprep.mubr.f32.mxu0 0.0
        %368 = vmatmul.mubr.f32.gmra.mrb[0].mxu0 %v248
        %v369 = vpop.f32.mrb[0].mxu0
        %v370 = vadd.f32 %v281, %v369
        %v371 = vpop.f32.mrb[0].mxu0
        %372 = vmatprep.mubr.f32.mxu0 0.0
        %373 = vmatmul.mubr.f32.gmra.mrb[0].mxu0 %v249
        %v374 = vpop.f32.mrb[0].mxu0
        %v375 = vadd.f32 %v281, %v374
        %v376 = vpop.f32.mrb[0].mxu0
        %377 = vmatprep.mubr.f32.mxu0 0.0
        %378 = vmatmul.mubr.f32.gmra.mrb[0].mxu0 %v250
        %v379 = vpop.f32.mrb[0].mxu0
        %v380 = vadd.f32 %v281, %v379
        %v381 = vpop.f32.mrb[0].mxu0
        %382 = vmatprep.mubr.f32.mxu0 0.0
        %383 = vmatmul.mubr.f32.gmra.mrb[0].mxu0 %v251
        %v384 = vpop.f32.mrb[0].mxu0
        %v385 = vadd.f32 %v281, %v384
        %v386 = vpop.f32.mrb[0].mxu0
        %387 = vmatprep.mubr.f32.mxu0 0.0
        %388 = vmatmul.mubr.f32.gmra.mrb[0].mxu0 %v252
        %v389 = vpop.f32.mrb[0].mxu0
        %v390 = vadd.f32 %v281, %v389
        %v391 = vpop.f32.mrb[0].mxu0
        %392 = vmatprep.mubr.f32.mxu0 0.0
        %393 = vmatmul.mubr.f32.gmra.mrb[0].mxu0 %v253
        %v394 = vpop.f32.mrb[0].mxu0
        %v395 = vadd.f32 %v281, %v394
        %v396 = vpop.f32.mrb[0].mxu0
        %397 = vmatprep.mubr.f32.mxu0 0.0
        %398 = vmatmul.mubr.f32.gmra.mrb[0].mxu0 %v254
        %v399 = vpop.f32.mrb[0].mxu0
        %v400 = vadd.f32 %v281, %v399
        %v401 = vpop.f32.mrb[0].mxu0
        %402 = vmatprep.mubr.f32.mxu0 0.0
        %403 = vmatmul.mubr.f32.gmra.mrb[0].mxu0 %v255
        %v404 = vpop.f32.mrb[0].mxu0
        %v405 = vadd.f32 %v281, %v404
        %v406 = vpop.f32.mrb[0].mxu0
        %407 = vmatprep.mubr.f32.mxu0 0.0
        %408 = vmatmul.mubr.f32.gmra.mrb[0].mxu0 %v256
        %v409 = vpop.f32.mrb[0].mxu0
        %v410 = vadd.f32 %v281, %v409
        %v411 = vpop.f32.mrb[0].mxu0
        %412 = vmatprep.mubr.f32.mxu0 0.0
        %413 = vmatmul.mubr.f32.gmra.mrb[0].mxu0 %v257
        %v414 = vpop.f32.mrb[0].mxu0
        %v415 = vadd.f32 %v281, %v414
        %v416 = vpop.f32.mrb[0].mxu0
        %417 = vmatprep.mubr.f32.mxu0 0.0
        %418 = vmatmul.mubr.f32.gmra.mrb[0].mxu0 %v258
        %v419 = vpop.f32.mrb[0].mxu0
        %v420 = vadd.f32 %v281, %v419
        %v421 = vpop.f32.mrb[0].mxu0
        %422 = vmatprep.mubr.f32.mxu0 0.0
        %423 = vmatmul.mubr.f32.gmra.mrb[0].mxu0 %v259
        %v424 = vpop.f32.mrb[0].mxu0
        %v425 = vadd.f32 %v281, %v424
        %v426 = vpop.f32.mrb[0].mxu0
        %427 = vdwg.mxu0
        %428 = vst [vmem:[%s234] sm:$0xff] %v350
        %429 = vst [vmem:[%s234 + $0x8] sm:$0xff] %v355
        %430 = vst [vmem:[%s234 + $0x10] sm:$0xff] %v360
        %431 = vst [vmem:[%s234 + $0x18] sm:$0xff] %v365
        %432 = vst [vmem:[%s234 + $0x20] sm:$0xff] %v370
        %433 = vst [vmem:[%s234 + $0x28] sm:$0xff] %v375
        %434 = vst [vmem:[%s234 + $0x30] sm:$0xff] %v380
        %435 = vst [vmem:[%s234 + $0x38] sm:$0xff] %v385
        %436 = vst [vmem:[%s234 + $0x40] sm:$0xff] %v390
        %437 = vst [vmem:[%s234 + $0x48] sm:$0xff] %v395
        %438 = vst [vmem:[%s234 + $0x50] sm:$0xff] %v400
        %439 = vst [vmem:[%s234 + $0x58] sm:$0xff] %v405
        %440 = vst [vmem:[%s234 + $0x60] sm:$0xff] %v410
        %441 = vst [vmem:[%s234 + $0x68] sm:$0xff] %v415
        %442 = vst [vmem:[%s234 + $0x70] sm:$0xff] %v420
        %443 = vst [vmem:[%s234 + $0x78] sm:$0xff] %v425
        %s444 = smul.u32 %s26, 128
        %v445 = vlaneseq
        %v446 = vshrl.u32 %v445, 7
        %v447 = vadd.s32 %v446, 8
        %v448 = vadd.s32 %v446, 16
        %v449 = vadd.s32 %v446, 24
        %v450 = vadd.s32 %v446, 32
        %v451 = vadd.s32 %v446, 40
        %v452 = vadd.s32 %v446, 48
        %v453 = vadd.s32 %v446, 56
        %v454 = vadd.s32 %v446, 64
        %v455 = vadd.s32 %v446, 72
        %v456 = vadd.s32 %v446, 80
        %v457 = vadd.s32 %v446, 88
        %v458 = vadd.s32 %v446, 96
        %v459 = vadd.s32 %v446, 104
        %v460 = vadd.s32 %v446, 112
        %v461 = vadd.s32 %v446, 120
        %v462 = vstv %s444
        %v463 = vadd.s32 %v462, %v446
        %v464 = vadd.s32 %v462, %v447
        %v465 = vadd.s32 %v462, %v448
        %v466 = vadd.s32 %v462, %v449
        %v467 = vadd.s32 %v462, %v450
        %v468 = vadd.s32 %v462, %v451
        %v469 = vadd.s32 %v462, %v452
        %v470 = vadd.s32 %v462, %v453
        %v471 = vadd.s32 %v462, %v454
        %v472 = vadd.s32 %v462, %v455
        %v473 = vadd.s32 %v462, %v456
        %v474 = vadd.s32 %v462, %v457
        %v475 = vadd.s32 %v462, %v458
        %v476 = vadd.s32 %v462, %v459
        %v477 = vadd.s32 %v462, %v460
        %v478 = vadd.s32 %v462, %v461
        %vm479 = vcmp.lt.s32.totalorder %v463, 392
        %vm480 = vcmp.lt.s32.totalorder %v464, 392
        %vm481 = vcmp.lt.s32.totalorder %v465, 392
        %vm482 = vcmp.lt.s32.totalorder %v466, 392
        %vm483 = vcmp.lt.s32.totalorder %v467, 392
        %vm484 = vcmp.lt.s32.totalorder %v468, 392
        %vm485 = vcmp.lt.s32.totalorder %v469, 392
        %vm486 = vcmp.lt.s32.totalorder %v470, 392
        %vm487 = vcmp.lt.s32.totalorder %v471, 392
        %vm488 = vcmp.lt.s32.totalorder %v472, 392
        %vm489 = vcmp.lt.s32.totalorder %v473, 392
        %vm490 = vcmp.lt.s32.totalorder %v474, 392
        %vm491 = vcmp.lt.s32.totalorder %v475, 392
        %vm492 = vcmp.lt.s32.totalorder %v476, 392
        %vm493 = vcmp.lt.s32.totalorder %v477, 392
        %vm494 = vcmp.lt.s32.totalorder %v478, 392
        %v495 = vsel %vm479, 1, 0
        %v496 = vsel %vm480, 1, 0
        %v497 = vsel %vm481, 1, 0
        %v498 = vsel %vm482, 1, 0
        %v499 = vsel %vm483, 1, 0
        %v500 = vsel %vm484, 1, 0
        %v501 = vsel %vm485, 1, 0
        %v502 = vsel %vm486, 1, 0
        %v503 = vsel %vm487, 1, 0
        %v504 = vsel %vm488, 1, 0
        %v505 = vsel %vm489, 1, 0
        %v506 = vsel %vm490, 1, 0
        %v507 = vsel %vm491, 1, 0
        %v508 = vsel %vm492, 1, 0
        %v509 = vsel %vm493, 1, 0
        %v510 = vsel %vm494, 1, 0
        %vm511 = vcmp.eq.s32.totalorder %v495, 1
        %vm512 = vcmp.eq.s32.totalorder %v496, 1
        %vm513 = vcmp.eq.s32.totalorder %v497, 1
        %vm514 = vcmp.eq.s32.totalorder %v498, 1
        %vm515 = vcmp.eq.s32.totalorder %v499, 1
        %vm516 = vcmp.eq.s32.totalorder %v500, 1
        %vm517 = vcmp.eq.s32.totalorder %v501, 1
        %vm518 = vcmp.eq.s32.totalorder %v502, 1
        %vm519 = vcmp.eq.s32.totalorder %v503, 1
        %vm520 = vcmp.eq.s32.totalorder %v504, 1
        %vm521 = vcmp.eq.s32.totalorder %v505, 1
        %vm522 = vcmp.eq.s32.totalorder %v506, 1
        %vm523 = vcmp.eq.s32.totalorder %v507, 1
        %vm524 = vcmp.eq.s32.totalorder %v508, 1
        %vm525 = vcmp.eq.s32.totalorder %v509, 1
        %vm526 = vcmp.eq.s32.totalorder %v510, 1
        %v527 = vsel %vm511, %v350, 0.0
        %v528 = vsel %vm512, %v355, 0.0
        %v529 = vsel %vm513, %v360, 0.0
        %v530 = vsel %vm514, %v365, 0.0
        %v531 = vsel %vm515, %v370, 0.0
        %v532 = vsel %vm516, %v375, 0.0
        %v533 = vsel %vm517, %v380, 0.0
        %v534 = vsel %vm518, %v385, 0.0
        %v535 = vsel %vm519, %v390, 0.0
        %v536 = vsel %vm520, %v395, 0.0
        %v537 = vsel %vm521, %v400, 0.0
        %v538 = vsel %vm522, %v405, 0.0
        %v539 = vsel %vm523, %v410, 0.0
        %v540 = vsel %vm524, %v415, 0.0
        %v541 = vsel %vm525, %v420, 0.0
        %v542 = vsel %vm526, %v425, 0.0
        %v543 = vadd.f32 %v527, %v528
        %v544 = vadd.f32 %v543, %v529
        %v545 = vadd.f32 %v544, %v530
        %v546 = vadd.f32 %v545, %v531
        %v547 = vadd.f32 %v546, %v532
        %v548 = vadd.f32 %v547, %v533
        %v549 = vadd.f32 %v548, %v534
        %v550 = vadd.f32 %v549, %v535
        %v551 = vadd.f32 %v550, %v536
        %v552 = vadd.f32 %v551, %v537
        %v553 = vadd.f32 %v552, %v538
        %v554 = vadd.f32 %v553, %v539
        %v555 = vadd.f32 %v554, %v540
        %v556 = vadd.f32 %v555, %v541
        %v557 = vadd.f32 %v556, %v542
        %v558 = vrot.slane %v557, 4
        %v559 = vadd.f32 %v557, %v558
        %v560 = vrot.slane %v559, 2
        %v561 = vadd.f32 %v559, %v560
        %v562 = vrot.slane %v561, 1
        %v563 = vadd.f32 %v561, %v562
        %v564 = vmul.f32 %v527, %v527
        %v565 = vmul.f32 %v528, %v528
        %v566 = vmul.f32 %v529, %v529
        %v567 = vmul.f32 %v530, %v530
        %v568 = vmul.f32 %v531, %v531
        %v569 = vmul.f32 %v532, %v532
        %v570 = vmul.f32 %v533, %v533
        %v571 = vmul.f32 %v534, %v534
        %v572 = vmul.f32 %v535, %v535
        %v573 = vmul.f32 %v536, %v536
        %v574 = vmul.f32 %v537, %v537
        %v575 = vmul.f32 %v538, %v538
        %v576 = vmul.f32 %v539, %v539
        %v577 = vmul.f32 %v540, %v540
        %v578 = vmul.f32 %v541, %v541
        %v579 = vmul.f32 %v542, %v542
        %v580 = vadd.f32 %v564, %v565
        %v581 = vadd.f32 %v580, %v566
        %v582 = vadd.f32 %v581, %v567
        %v583 = vadd.f32 %v582, %v568
        %v584 = vadd.f32 %v583, %v569
        %v585 = vadd.f32 %v584, %v570
        %v586 = vadd.f32 %v585, %v571
        %v587 = vadd.f32 %v586, %v572
        %v588 = vadd.f32 %v587, %v573
        %v589 = vadd.f32 %v588, %v574
        %v590 = vadd.f32 %v589, %v575
        %v591 = vadd.f32 %v590, %v576
        %v592 = vadd.f32 %v591, %v577
        %v593 = vadd.f32 %v592, %v578
        %v594 = vadd.f32 %v593, %v579
        %v595 = vrot.slane %v594, 4
        %v596 = vadd.f32 %v594, %v595
        %v597 = vrot.slane %v596, 2
        %v598 = vadd.f32 %v596, %v597
        %v599 = vrot.slane %v598, 1
        %v600 = vadd.f32 %v598, %v599
        %vm601 = vcmask 1040384
        %v602 = vsel %vm601, %v563, %v600
        %603 = vst [vmem:[%s241] sm:$0x3] %v602
        %s604 = sand.u32 %s102, 1
        %s605 = scalar_lea.sflag [#allocation4], %s604
        %s606 = sand.u32 %s102, 1
        %s607 = smul.addr %s606, 128
        %s608 = scalar_lea.vmem [#allocation7], %s607
        %s609 = sand.u32 %s128, 1
        %s610 = scalar_lea.sflag [#allocation9], %s609
        %s611 = sand.u32 %s128, 1
        %s612 = smul.addr %s611, 2
        %s613 = scalar_lea.vmem [#allocation8], %s612
        // Predicated region
        $region41: #{tpu_custom_call.1} parent=31 // pred_check
          %p614 = pneg %p112
        $region42: #{tpu_custom_call.1} parent=31 // pred_check_branch
          %616 = sbr.rel (%p614) target = $region44
        $region43: #{tpu_custom_call.1} parent=31 // pred_region
          %s617 = smul.u32 16, %s26
          %s619 = ssub.s32 2048, 2048
          %620 = vsyncadd %s605, %s619
          %s621 = smul.addr %s617, 128
          %s622 = scalar_lea.hbm %s3, %s621
          %s623 = sshll.u32 %s608, 4
          %s624 = int_to_ptr.vmem [resolvable:$true] %s623
          %629 = dma.vmem_to_hbm [thread:$0]  %s624, 2048, %s622, %s605, 128, 128, 8
        $region44: #{tpu_custom_call.1} parent=31 // pred_fallthru
          _
        // Predicated region
        $region45: #{tpu_custom_call.1} parent=31 // pred_check
          %p630 = pneg %p138
        $region46: #{tpu_custom_call.1} parent=31 // pred_check_branch
          %632 = sbr.rel (%p630) target = $region48
        $region47: #{tpu_custom_call.1} parent=31 // pred_region
          %s634 = ssub.s32 32, 32
          %635 = vsyncadd %s610, %s634
          %s636 = smul.addr %s26, 32
          %s637 = scalar_lea.hbm %s4, %s636
          %s639 = sshll.u32 %s613, 4
          %s640 = int_to_ptr.vmem [resolvable:$true] %s639
          %642 = dma.vmem_to_hbm [thread:$0]  %s640, 32, %s637, %s610
        $region48: #{tpu_custom_call.1} parent=31 // pred_fallthru
          _
      $region32: #{tpu_custom_call.1} parent=5 // pred_fallthru
        _
      %p643 = scmp.le.s32.totalorder 2, %s21
      // Predicated region
      $region49: #{tpu_custom_call.1} parent=5 // pred_check
        %p644 = pneg %p643
      $region50: #{tpu_custom_call.1} parent=5 // pred_check_branch
        %646 = sbr.rel (%p644) target = $region52
      $region51: #{tpu_custom_call.1} parent=5 // pred_region
        %s647 = ssub.s32 %s21, 2
        // Predicated region
        $region53: #{tpu_custom_call.1} parent=51 // pred_check
          %p648 = pneg %p118
        $region54: #{tpu_custom_call.1} parent=51 // pred_check_branch
          %650 = sbr.rel (%p648) target = $region56
        $region55: #{tpu_custom_call.1} parent=51 // pred_region
          %s651 = sand.u32 %s103, 1
          %s652 = scalar_lea.sflag [#allocation4], %s651
          %s653 = sand.u32 %s103, 1
          %s654 = smul.addr %s653, 128
          %s655 = scalar_lea.vmem [#allocation7], %s654
          %656 = dma.done %s652, 2048
        $region56: #{tpu_custom_call.1} parent=51 // pred_fallthru
          _
        // Predicated region
        $region57: #{tpu_custom_call.1} parent=51 // pred_check
          %p657 = pneg %p144
        $region58: #{tpu_custom_call.1} parent=51 // pred_check_branch
          %659 = sbr.rel (%p657) target = $region60
        $region59: #{tpu_custom_call.1} parent=51 // pred_region
          %s660 = sand.u32 %s129, 1
          %s661 = scalar_lea.sflag [#allocation9], %s660
          %s662 = sand.u32 %s129, 1
          %s663 = smul.addr %s662, 2
          %s664 = scalar_lea.vmem [#allocation8], %s663
          %665 = dma.done %s661, 32
        $region60: #{tpu_custom_call.1} parent=51 // pred_fallthru
          _
      $region52: #{tpu_custom_call.1} parent=5 // pred_fallthru
        _
    $region6: #{tpu_custom_call.1} parent=1 // loop_footer
      %s25 = sadd.s32 1, %s21
    $region7: #{tpu_custom_call.1} parent=1 // loop_footer_branch
      %20 = sbr.rel target = $region3
    $region8: #{tpu_custom_call.1} parent=1 // loop_exit
      _
    %666 = vsyncpa [#allocation3], 1
    %s667 = scalar_lea.sflag [#allocation3], 1
    %668 = vsyncpa %s667, 1
    %669 = vsyncpa [#allocation6], 1
    %670 = vsyncpa [#allocation4], 1
    %s671 = scalar_lea.sflag [#allocation4], 1
    %672 = vsyncpa %s671, 1
    %673 = vsyncpa [#allocation9], 1
    %s674 = scalar_lea.sflag [#allocation9], 1
    %675 = vsyncpa %s674, 1

</llo_original>
